<compile_context>
chip_gen: v5e
topology: v5e:2x2
jax: 0.10.0
libtpu: 0.0.40
codegen_flags: <defaults>
</compile_context>

<pallas_src>
import jax
import jax.numpy as jnp
from jax import lax
from jax.experimental import pallas as pl
from jax.experimental.pallas import tpu as pltpu


def normed_linear_kernel(x_ref, w_ref, o_ref):
    eps = 1e-12  # torch.nn.functional.normalize default eps

    x = x_ref[...]  # (tm, K)  native dtype -> straight to the MXU
    w = w_ref[...]  # (K, tn)

    # Raw matmul on un-normalized operands, f32 accumulation on the MXU.
    raw = jnp.dot(x, w, preferred_element_type=jnp.float32)

    # Row sum-of-squares of the x tile and column sum-of-squares of the w tile
    # (f32 math regardless of operand dtype; no normalized copies are built).
    xf = x.astype(jnp.float32)
    wf = w.astype(jnp.float32)
    x_ss = jnp.sum(xf * xf, axis=1, keepdims=True)  # (tm, 1)
    w_ss = jnp.sum(wf * wf, axis=0, keepdims=True)  # (1, tn)

    # 1 / max(sqrt(ss), eps) == rsqrt(max(ss, eps^2))  (exact; EUP rsqrt)
    inv_x = lax.rsqrt(jnp.maximum(x_ss, eps * eps))
    inv_w = lax.rsqrt(jnp.maximum(w_ss, eps * eps))

    o_ref[...] = (raw * inv_x * inv_w).astype(o_ref.dtype)


def normed_linear(x, weight, *, tm=256, tn=256):
    n, k = x.shape
    k_w, out_f = weight.shape
    assert k == k_w

    # Tile over (batch, out_features); full K (reduction axis) per block, so
    # each grid point is independent (no cross-block accumulation needed).
    tm = min(tm, n)
    tn = min(tn, out_f)
    # (8,128) block constraint: a tiled block dim must be a multiple of the
    # hardware tile, or span the full array dim.
    if n % tm != 0 or tm % 8 != 0:
        tm = n
    if out_f % tn != 0 or tn % 128 != 0:
        tn = out_f
    grid = (n // tm, out_f // tn)

    # VMEM budget: double-buffered x / w / out tiles + headroom; capped so it
    # stays safe on v7x (64 MiB physical VMEM per TensorCore).
    est = 2 * (
        tm * k * x.dtype.itemsize
        + k * tn * weight.dtype.itemsize
        + tm * tn * 4
    ) + (2 << 20)
    vmem_limit = int(min(max(est, 16 << 20), 48 << 20))

    return pl.pallas_call(
        normed_linear_kernel,
        out_shape=jax.ShapeDtypeStruct((n, out_f), jnp.float32),
        grid_spec=pltpu.PrefetchScalarGridSpec(
            num_scalar_prefetch=0,
            grid=grid,
            in_specs=[
                pl.BlockSpec((tm, k), lambda i, j: (i, 0)),
                pl.BlockSpec((k, tn), lambda i, j: (0, j)),
            ],
            out_specs=pl.BlockSpec((tm, tn), lambda i, j: (i, j)),
        ),
        compiler_params=pltpu.CompilerParams(
            dimension_semantics=("parallel", "parallel"),
            vmem_limit_bytes=vmem_limit,
        ),
    )(x, weight)


def init_normed_linear_weight(key, in_features, out_features):
    """Deterministic re-implementation of the PyTorch init:
    uniform_(-1, 1).renorm_(2, 1, 1e-05).mul_(100000.0)
    renorm_ along dim=1 clamps each column's L2 norm to <= 1e-5, then *1e5.
    """
    w = jax.random.uniform(
        key, (in_features, out_features), minval=-1.0, maxval=1.0,
        dtype=jnp.float32,
    )
    maxnorm = 1e-05
    col_norm = jnp.sqrt(jnp.sum(w * w, axis=0, keepdims=True))
    # torch renorm scales only sub-tensors whose norm exceeds maxnorm
    scale = jnp.where(col_norm > maxnorm, maxnorm / (col_norm + 1e-7), 1.0)
    return w * scale * 100000.0


def reference_normed_linear(x, weight):
    # Matches torch: normalize first, then matmul.
    eps = 1e-12
    xn = x / jnp.maximum(
        jnp.sqrt(jnp.sum(x * x, axis=1, keepdims=True)), eps
    )
    wn = weight / jnp.maximum(
        jnp.sqrt(jnp.sum(weight * weight, axis=0, keepdims=True)), eps
    )
    return xn @ wn


if __name__ == "__main__":
    key = jax.random.PRNGKey(0)
    kx, kw = jax.random.split(key)

    batch = 8
    in_features = 32
    out_features = 128

    x = jax.random.normal(kx, (batch, in_features), dtype=jnp.float32)
    weight = init_normed_linear_weight(kw, in_features, out_features)

    out = normed_linear(x, weight)
    jax.block_until_ready(out)

    ref = reference_normed_linear(x, weight)
    assert out.shape == (batch, out_features)
    # Tolerance slightly relaxed vs 1e-5: folding the normalization into a
    # post-matmul scale reorders float ops relative to torch's normalize->mm.
    assert jnp.allclose(out, ref, atol=1e-4, rtol=1e-4), (
        float(jnp.max(jnp.abs(out - ref)))
    )
    print("KERNEL_OK")
</pallas_src>

<mosaic_0001>
module attributes {stable_mosaic.version = 11 : i64} {
  func.func @normed_linear_kernel(%arg0: i32, %arg1: i32, %arg2: memref<8x32xf32, #tpu.memory_space<vmem>>, %arg3: memref<32x128xf32, #tpu.memory_space<vmem>>, %arg4: memref<8x128xf32, #tpu.memory_space<vmem>>) attributes {dimension_semantics = [#tpu.dimension_semantics<parallel>, #tpu.dimension_semantics<parallel>], iteration_bounds = array<i64: 1, 1>, scalar_prefetch = 0 : i64, scratch_operands = 0 : i64, tpu.core_type = #tpu.core_type<tc>, window_params = [{transform_indices = @transform_0, window_bounds = array<i64: 8, 32>}, {transform_indices = @transform_1, window_bounds = array<i64: 32, 128>}, {transform_indices = @transform_2, window_bounds = array<i64: 8, 128>}]} {
    %c0 = arith.constant 0 : index
    %c0_0 = arith.constant 0 : index
    %0 = vector.load %arg2[%c0, %c0_0] : memref<8x32xf32, #tpu.memory_space<vmem>>, vector<8x32xf32>
    %c0_1 = arith.constant 0 : index
    %c0_2 = arith.constant 0 : index
    %1 = vector.load %arg3[%c0_1, %c0_2] : memref<32x128xf32, #tpu.memory_space<vmem>>, vector<32x128xf32>
    %cst = arith.constant dense<0.000000e+00> : vector<8x128xf32>
    %2 = tpu.matmul %0, %1, %cst {dimension_numbers = #tpu.dot_dimension_numbers<[1], [0], [0], [1], [0, 0, 1, 1], [], []>} : vector<8x32xf32>, vector<32x128xf32>, vector<8x128xf32> -> vector<8x128xf32>
    %3 = arith.mulf %0, %0 : vector<8x32xf32>
    %cst_3 = arith.constant dense<0.000000e+00> : vector<8xf32>
    %4 = vector.multi_reduction <add>, %3, %cst_3 [1] : vector<8x32xf32> to vector<8xf32>
    %5 = vector.shape_cast %4 : vector<8xf32> to vector<8x1xf32>
    %6 = arith.mulf %1, %1 : vector<32x128xf32>
    %cst_4 = arith.constant dense<0.000000e+00> : vector<128xf32>
    %7 = vector.multi_reduction <add>, %6, %cst_4 [0] : vector<32x128xf32> to vector<128xf32>
    %8 = vector.shape_cast %7 : vector<128xf32> to vector<1x128xf32>
    %cst_5 = arith.constant 1.000000e-24 : f32
    %9 = vector.broadcast %cst_5 : f32 to vector<8x1xf32>
    %10 = arith.maximumf %5, %9 : vector<8x1xf32>
    %11 = math.rsqrt %10 : vector<8x1xf32>
    %cst_6 = arith.constant 1.000000e-24 : f32
    %12 = vector.broadcast %cst_6 : f32 to vector<1x128xf32>
    %13 = arith.maximumf %8, %12 : vector<1x128xf32>
    %14 = math.rsqrt %13 : vector<1x128xf32>
    %15 = vector.broadcast %11 : vector<8x1xf32> to vector<8x128xf32>
    %16 = arith.mulf %2, %15 : vector<8x128xf32>
    %17 = vector.broadcast %14 : vector<1x128xf32> to vector<8x128xf32>
    %18 = arith.mulf %16, %17 : vector<8x128xf32>
    %c0_7 = arith.constant 0 : index
    %c0_8 = arith.constant 0 : index
    %19 = vector.load %arg4[%c0_7, %c0_8] : memref<8x128xf32, #tpu.memory_space<vmem>>, vector<8x128xf32>
    tpu.vector_store %arg4[%c0_7, %c0_8], %18 {strides = array<i32>} : memref<8x128xf32, #tpu.memory_space<vmem>>, vector<8x128xf32>,
    return
  }
  func.func @transform_0(%arg0: i32, %arg1: i32) -> (i32, i32) {
    %c0_i32 = arith.constant 0 : i32
    %c0_i32_0 = arith.constant 0 : i32
    return %arg0, %c0_i32 : i32, i32
  }
  func.func @transform_1(%arg0: i32, %arg1: i32) -> (i32, i32) {
    %c0_i32 = arith.constant 0 : i32
    %c0_i32_0 = arith.constant 0 : i32
    return %c0_i32, %arg1 : i32, i32
  }
  func.func @transform_2(%arg0: i32, %arg1: i32) -> (i32, i32) {
    %c0_i32 = arith.constant 0 : i32
    return %arg0, %arg1 : i32, i32
  }
}

</mosaic_0001>

<llo_original>
// kernel: tpu_custom_call.1
$region0: #{tpu_custom_call.1}
  #allocation0 [shape = 'u32[]', space=smem, size = 0x4, offset = 0x4, fixed_abs, tag = 'smem constant byte address 0x4 - core index']
  #allocation1 [shape = 'u32[72,128]{1,0:T(1,128)}', space=vmem, size = 0x9000, scoped, tag = 'internal scratch']
  %s0 = inlined_call_operand.hbm [shape: f32[8,32], index: 0, kind: input, shape index: {}]
  %s1 = inlined_call_operand.hbm [shape: f32[32,128], index: 1, kind: input, shape index: {}]
  %s2 = inlined_call_operand.hbm [shape: f32[8,128], index: 2, kind: output, shape index: {}]
  %s3 = sld [smem:[#allocation0]]
  $region26: #{tpu_custom_call.1} parent=0
    _
  %s5 = ssub.s32 1, %s3
  %s6 = scalar_select 0, %s5, %s3
  $region1: #{tpu_custom_call.1} parent=0
    #allocation2 [shape = 'u8[4096]{0}', space=vmem, size = 0x1000, scoped, tag = 'input window, operand 0, single buffered']
    #allocation3 [shape = 's32[1]{0}', space=sflag, size = 0x4, scoped, tag = 'scoped memory for tpu_custom_call.1']
    #allocation4 [shape = 's32[1]{0}', space=sflag, size = 0x4, scoped, tag = 'scoped memory for tpu_custom_call.1']
    #allocation5 [shape = 'u8[16384]{0}', space=vmem, size = 0x4000, scoped, tag = 'input window, operand 1, single buffered']
    #allocation6 [shape = 's32[1]{0}', space=sflag, size = 0x4, scoped, tag = 'scoped memory for tpu_custom_call.1']
    #allocation7 [shape = 'u8[4096]{0}', space=vmem, size = 0x1000, scoped, tag = 'output window, operand 0, single buffered']
    %7 = vsyncpa [#allocation3], 0
    %8 = vsyncpa [#allocation6], 0
    %9 = vsyncpa [#allocation4], 0
    // Predicated region
    $region2: #{tpu_custom_call.1} parent=1 // pred_check
      _
    $region3: #{tpu_custom_call.1} parent=1 // pred_check_branch
      %11 = sbr.rel (0) target = $region5
    $region4: #{tpu_custom_call.1} parent=1 // pred_region
      %13 = vsyncadd [#allocation3], 0
      %s15 = sshll.u32 %s0, 4
      %s16 = int_to_ptr.hbm [resolvable:$true] %s15
      %s17 = sshll.u32 [#allocation2], 4
      %s18 = int_to_ptr.vmem [resolvable:$true] %s17
      %20 = dma.hbm_to_vmem [thread:$0]  %s16, 128, %s18, [#allocation3]
    $region5: #{tpu_custom_call.1} parent=1 // pred_fallthru
      _
    // Predicated region
    $region6: #{tpu_custom_call.1} parent=1 // pred_check
      _
    $region7: #{tpu_custom_call.1} parent=1 // pred_check_branch
      %22 = sbr.rel (0) target = $region9
    $region8: #{tpu_custom_call.1} parent=1 // pred_region
      %24 = vsyncadd [#allocation6], 0
      %s25 = sshll.u32 %s1, 4
      %s26 = int_to_ptr.hbm [resolvable:$true] %s25
      %s27 = sshll.u32 [#allocation5], 4
      %s28 = int_to_ptr.vmem [resolvable:$true] %s27
      %33 = dma.hbm_to_vmem [thread:$0]  %s26, 512, %s28, [#allocation6], 128, 128, 8
    $region9: #{tpu_custom_call.1} parent=1 // pred_fallthru
      _
    // Predicated region
    $region10: #{tpu_custom_call.1} parent=1 // pred_check
      _
    $region11: #{tpu_custom_call.1} parent=1 // pred_check_branch
      %35 = sbr.rel (0) target = $region13
    $region12: #{tpu_custom_call.1} parent=1 // pred_region
      %37 = dma.done [#allocation3], 128
    $region13: #{tpu_custom_call.1} parent=1 // pred_fallthru
      _
    // Predicated region
    $region14: #{tpu_custom_call.1} parent=1 // pred_check
      _
    $region15: #{tpu_custom_call.1} parent=1 // pred_check_branch
      %39 = sbr.rel (0) target = $region17
    $region16: #{tpu_custom_call.1} parent=1 // pred_region
      %41 = dma.done [#allocation6], 512
    $region17: #{tpu_custom_call.1} parent=1 // pred_fallthru
      _
    %v42 = vld [vmem:[#allocation2] sm:$0xff]
    %v43 = vld [vmem:[#allocation5] sm:$0xff]
    %v44 = vld [vmem:[#allocation5 + $0x8] sm:$0xff]
    %v45 = vld [vmem:[#allocation5 + $0x10] sm:$0xff]
    %v46 = vld [vmem:[#allocation5 + $0x18] sm:$0xff]
    %vm47 = vcmask 261120
    %v49 = vsel %vm47, %v42, 0
    %51 = vmatpush.msra.mxu0 0.0
    %52 = vmatpush.msra.mxu0 0.0
    %53 = vmatpush.msra.mxu0 0.0
    %54 = vmatpush.msra.mxu0 0.0
    %55 = vmatpush.msra.mxu0 0.0
    %56 = vmatpush.msra.mxu0 0.0
    %57 = vmatpush.msra.mxu0 0.0
    %58 = vmatpush.msra.mxu0 0.0
    %59 = vmatpush.msra.mxu0 0.0
    %60 = vmatpush.msra.mxu0 0.0
    %61 = vmatpush.msra.mxu0 0.0
    %62 = vmatpush.msra.mxu0 0.0
    %63 = vmatpush.msra.mxu0 %v46
    %64 = vmatpush.msra.mxu0 %v45
    %65 = vmatpush.msra.mxu0 %v44
    %66 = vmatpush.msra.mxu0 %v43
    %67 = vmatmul.f32.gmra.mxu0 %v49
    %v68 = vpop.f32.mrf.mxu0
    %v69 = vadd.f32 0.0, %v68
    %70 = vdwg.mxu0
    %v71 = vmul.f32 %v42, %v42
    %v72 = vsel %vm47, %v71, 0.0
    %73 = vadd.xlane.f32.xlu0 %v72
    %v74 = vpop.xlane.xlu0 %73
    %v75 = vmul.f32 %v43, %v43
    %v76 = vmul.f32 %v44, %v44
    %v77 = vmul.f32 %v45, %v45
    %v78 = vmul.f32 %v46, %v46
    %v79 = vadd.f32 %v75, %v76
    %v80 = vadd.f32 %v79, %v77
    %v81 = vadd.f32 %v80, %v78
    %v82 = vrot.slane %v81, 4
    %v83 = vadd.f32 %v81, %v82
    %v84 = vrot.slane %v83, 2
    %v85 = vadd.f32 %v83, %v84
    %v86 = vrot.slane %v85, 1
    %v87 = vadd.f32 %v85, %v86
    %v88 = vmax.f32 %v74, 1e-24
    %v89 = vrsqrt.pop %v88
    %v90 = vmul.f32 %v89, %v88
    %v91 = vmul.f32 %v90, %v89
    %v92 = vmul.f32 0.5, %v91
    %v93 = vsub.f32 1.5, %v92
    %v94 = vmul.f32 %v89, %v93
    %vm95 = vweird.f32 %v88
    %vm96 = vweird.f32 %v89
    %vm97 = vmor %vm95, %vm96
    %v98 = vsel %vm97, %v89, %v94
    %v99 = vmax.f32 %v87, 1e-24
    %v100 = vrsqrt.pop %v99
    %v101 = vmul.f32 %v100, %v99
    %v102 = vmul.f32 %v101, %v100
    %v103 = vmul.f32 0.5, %v102
    %v104 = vsub.f32 1.5, %v103
    %v105 = vmul.f32 %v100, %v104
    %vm106 = vweird.f32 %v99
    %vm107 = vweird.f32 %v100
    %vm108 = vmor %vm106, %vm107
    %v109 = vsel %vm108, %v100, %v105
    %v110 = vmul.f32 %v69, %v98
    %v111 = vmul.f32 %v110, %v109
    %112 = vst [vmem:[#allocation7] sm:$0xff] %v111
    // Predicated region
    $region18: #{tpu_custom_call.1} parent=1 // pred_check
      _
    $region19: #{tpu_custom_call.1} parent=1 // pred_check_branch
      %114 = sbr.rel (0) target = $region21
    $region20: #{tpu_custom_call.1} parent=1 // pred_region
      %116 = vsyncadd [#allocation4], 0
      %s118 = sshll.u32 [#allocation7], 4
      %s119 = int_to_ptr.vmem [resolvable:$true] %s118
      %s120 = sshll.u32 %s2, 4
      %s121 = int_to_ptr.hbm [resolvable:$true] %s120
      %123 = dma.vmem_to_hbm [thread:$0]  %s119, 128, %s121, [#allocation4]
    $region21: #{tpu_custom_call.1} parent=1 // pred_fallthru
      _
    // Predicated region
    $region22: #{tpu_custom_call.1} parent=1 // pred_check
      _
    $region23: #{tpu_custom_call.1} parent=1 // pred_check_branch
      %125 = sbr.rel (0) target = $region25
    $region24: #{tpu_custom_call.1} parent=1 // pred_region
      %127 = dma.done [#allocation4], 128
    $region25: #{tpu_custom_call.1} parent=1 // pred_fallthru
      _
    %128 = vsyncpa [#allocation3], 1
    %129 = vsyncpa [#allocation6], 1
    %130 = vsyncpa [#allocation4], 1

</llo_original>
